<compile_context>
chip_gen: v6e
topology: v6e:2x2x1
jax: 0.10.0
libtpu: 0.0.40
codegen_flags: <defaults>
</compile_context>

<pallas_src>
import jax
import jax.numpy as jnp
from jax.experimental import pallas as pl
from jax.experimental.pallas import tpu as pltpu

# Layer sizes from the PyTorch module.
DIMS = [8, 16, 32, 100, 40, 1]


def _round_up(n, m):
    return ((n + m - 1) // m) * m


def mlp_kernel(x_ref, w1_ref, w2_ref, w3_ref, w4_ref, w5_ref, b_ref, o_ref):
    """One batch tile: x (TB, 8) -> out (TB, 1). Weights are VMEM-resident."""
    h = x_ref[...].astype(jnp.float32)

    def dense_relu(h, w_ref, row, n_out):
        # Matmul operands may be bf16 (weights' dtype); accumulation is f32.
        mm = jnp.dot(h.astype(w_ref.dtype), w_ref[...],
                     preferred_element_type=jnp.float32)
        return jnp.maximum(mm + b_ref[row:row + 1, 0:n_out], 0.0)

    h = dense_relu(h, w1_ref, 0, DIMS[1])   # 8   -> 16
    h = dense_relu(h, w2_ref, 1, DIMS[2])   # 16  -> 32
    h = dense_relu(h, w3_ref, 2, DIMS[3])   # 32  -> 100
    h = dense_relu(h, w4_ref, 3, DIMS[4])   # 100 -> 40

    # Final 40 -> 1 layer: VPU multiply + XLU lane reduction (no MXU push for
    # a 1-useful-lane matmul). w5_ref is the (1, 40) f32 weight row.
    y = jnp.sum(h * w5_ref[...], axis=-1, keepdims=True) + b_ref[4:5, 0:1]
    o_ref[...] = y.astype(o_ref.dtype)


def _pack_biases(params):
    """Pack the 5 bias vectors into one (8, 128) f32 VMEM tile (row i = layer i)."""
    b_cat = jnp.zeros((8, 128), jnp.float32)
    for i, (_, b) in enumerate(params):
        b_cat = b_cat.at[i, : b.shape[-1]].set(b.reshape(-1).astype(jnp.float32))
    return b_cat


def _prepare_params(params, use_bf16):
    mm_dtype = jnp.bfloat16 if use_bf16 else jnp.float32
    ws = [w.astype(mm_dtype) for (w, _) in params[:4]]          # MXU layers
    w5_row = params[4][0].reshape(1, -1).astype(jnp.float32)    # (1, 40), VPU path
    b_cat = _pack_biases(params)
    return ws, w5_row, b_cat


def mlp_forward(x, params, *, block_b=1024, use_bf16=True):
    """x: (B, 8) f32. params: list of (W (in,out), b (1,out)) f32, PyTorch layout W.T."""
    B, feat = x.shape
    assert feat == DIMS[0], feat
    ws, w5_row, b_cat = _prepare_params(params, use_bf16)

    # Batch tile: large by default (amortize ~0.35 us/step), shrunk for tiny B.
    tb = max(8, _round_up(min(block_b, _round_up(B, 8)), 8))
    B_pad = _round_up(B, tb)
    x_pad = jnp.pad(x, ((0, B_pad - B), (0, 0))) if B_pad != B else x

    const2 = lambda i: (0, 0)
    in_specs = [pl.BlockSpec((tb, DIMS[0]), lambda i: (i, 0))]          # x tile
    in_specs += [pl.BlockSpec(w.shape, const2) for w in ws]             # resident weights
    in_specs += [pl.BlockSpec(w5_row.shape, const2),                    # resident w5 row
                 pl.BlockSpec(b_cat.shape, const2)]                     # resident biases

    flops = 2 * B_pad * sum(DIMS[i] * DIMS[i + 1] for i in range(len(DIMS) - 1))
    bytes_accessed = (x_pad.size * x_pad.dtype.itemsize
                      + B_pad * DIMS[-1] * 4
                      + sum(int(w.size) * w.dtype.itemsize for w in ws)
                      + w5_row.size * 4 + b_cat.size * 4)

    out = pl.pallas_call(
        mlp_kernel,
        out_shape=jax.ShapeDtypeStruct((B_pad, DIMS[-1]), jnp.float32),
        grid=(B_pad // tb,),
        in_specs=in_specs,
        out_specs=pl.BlockSpec((tb, DIMS[-1]), lambda i: (i, 0)),
        compiler_params=pltpu.CompilerParams(
            dimension_semantics=("parallel",),          # megacore-shard batch on v7x
            vmem_limit_bytes=32 * 1024 * 1024,          # lift v5e's 16 MiB default
        ),
        cost_estimate=pl.CostEstimate(
            flops=flops, transcendentals=0, bytes_accessed=bytes_accessed),
    )(x_pad, *ws, w5_row, b_cat)

    return out[:B]


def init_params(key):
    """PyTorch nn.Linear default init: U[-1/sqrt(fan_in), +1/sqrt(fan_in)]."""
    params = []
    for i in range(len(DIMS) - 1):
        fan_in, fan_out = DIMS[i], DIMS[i + 1]
        key, kw, kb = jax.random.split(key, 3)
        bound = 1.0 / jnp.sqrt(jnp.float32(fan_in))
        w = jax.random.uniform(kw, (fan_in, fan_out), jnp.float32, -bound, bound)
        b = jax.random.uniform(kb, (1, fan_out), jnp.float32, -bound, bound)
        params.append((w, b))
    return params


def mlp_reference(x, params, *, use_bf16=True):
    """Pure-JAX reference mirroring the kernel math (bf16 matmul operands optional)."""
    mm_dtype = jnp.bfloat16 if use_bf16 else jnp.float32
    h = x.astype(jnp.float32)
    for w, b in params[:4]:
        h = jnp.dot(h.astype(mm_dtype), w.astype(mm_dtype),
                    preferred_element_type=jnp.float32) + b
        h = jnp.maximum(h, 0.0)
    w5, b5 = params[4]
    return jnp.sum(h * w5.reshape(1, -1).astype(jnp.float32),
                   axis=-1, keepdims=True) + b5


if __name__ == "__main__":
    key = jax.random.PRNGKey(0)
    key, kx = jax.random.split(key)

    batch = 20  # not a multiple of the tile -> exercises padded tail tile
    x = jax.random.normal(kx, (batch, DIMS[0]), jnp.float32)
    params = init_params(key)

    # bf16-matmul / f32-accumulate path (v6e/v7x recommendation), small tile so
    # the demo runs several grid steps including a padded tail.
    out = jax.block_until_ready(mlp_forward(x, params, block_b=8, use_bf16=True))
    ref = mlp_reference(x, params, use_bf16=True)
    assert out.shape == (batch, 1), out.shape
    assert jnp.allclose(out, ref, atol=1e-4, rtol=1e-4), "mismatch (bf16 path)"

    # Pure-f32 path: exactly the PyTorch module's forward semantics.
    out32 = jax.block_until_ready(mlp_forward(x, params, block_b=1024, use_bf16=False))
    ref32 = mlp_reference(x, params, use_bf16=False)
    assert jnp.allclose(out32, ref32, atol=1e-5, rtol=1e-5), "mismatch (f32 path)"

    print("KERNEL_OK")
</pallas_src>

<mosaic_0001>
module attributes {stable_mosaic.version = 11 : i64} {
  func.func @mlp_kernel(%arg0: i32, %arg1: memref<8x8xf32, #tpu.memory_space<vmem>>, %arg2: memref<8x16xbf16, #tpu.memory_space<vmem>>, %arg3: memref<16x32xbf16, #tpu.memory_space<vmem>>, %arg4: memref<32x100xbf16, #tpu.memory_space<vmem>>, %arg5: memref<100x40xbf16, #tpu.memory_space<vmem>>, %arg6: memref<1x40xf32, #tpu.memory_space<vmem>>, %arg7: memref<8x128xf32, #tpu.memory_space<vmem>>, %arg8: memref<8x1xf32, #tpu.memory_space<vmem>>) attributes {dimension_semantics = [#tpu.dimension_semantics<parallel>], iteration_bounds = array<i64: 3>, scalar_prefetch = 0 : i64, scratch_operands = 0 : i64, tpu.core_type = #tpu.core_type<tc>, window_params = [{transform_indices = @transform_0, window_bounds = array<i64: 8, 8>}, {pipeline_mode = #tpu.pipeline_mode<synchronous>, transform_indices = @transform_1, window_bounds = array<i64: 8, 16>}, {pipeline_mode = #tpu.pipeline_mode<synchronous>, transform_indices = @transform_2, window_bounds = array<i64: 16, 32>}, {pipeline_mode = #tpu.pipeline_mode<synchronous>, transform_indices = @transform_3, window_bounds = array<i64: 32, 100>}, {pipeline_mode = #tpu.pipeline_mode<synchronous>, transform_indices = @transform_4, window_bounds = array<i64: 100, 40>}, {pipeline_mode = #tpu.pipeline_mode<synchronous>, transform_indices = @transform_5, window_bounds = array<i64: 1, 40>}, {pipeline_mode = #tpu.pipeline_mode<synchronous>, transform_indices = @transform_6, window_bounds = array<i64: 8, 128>}, {transform_indices = @transform_7, window_bounds = array<i64: 8, 1>}]} {
    %c0 = arith.constant 0 : index
    %c0_0 = arith.constant 0 : index
    %0 = vector.load %arg1[%c0, %c0_0] : memref<8x8xf32, #tpu.memory_space<vmem>>, vector<8x8xf32>
    %1 = arith.truncf %0 : vector<8x8xf32> to vector<8x8xbf16>
    %c0_1 = arith.constant 0 : index
    %c0_2 = arith.constant 0 : index
    %2 = vector.load %arg2[%c0_1, %c0_2] : memref<8x16xbf16, #tpu.memory_space<vmem>>, vector<8x16xbf16>
    %cst = arith.constant dense<0.000000e+00> : vector<8x16xf32>
    %3 = tpu.matmul %1, %2, %cst {dimension_numbers = #tpu.dot_dimension_numbers<[1], [0], [0], [1], [0, 0, 1, 1], [], []>} : vector<8x8xbf16>, vector<8x16xbf16>, vector<8x16xf32> -> vector<8x16xf32>
    %c0_3 = arith.constant 0 : index
    %c0_4 = arith.constant 0 : index
    %4 = vector.load %arg7[%c0_3, %c0_4] : memref<8x128xf32, #tpu.memory_space<vmem>>, vector<1x16xf32>
    %5 = vector.broadcast %4 : vector<1x16xf32> to vector<8x16xf32>
    %6 = arith.addf %3, %5 : vector<8x16xf32>
    %cst_5 = arith.constant 0.000000e+00 : f32
    %7 = vector.broadcast %cst_5 : f32 to vector<8x16xf32>
    %8 = arith.maximumf %6, %7 : vector<8x16xf32>
    %9 = arith.truncf %8 : vector<8x16xf32> to vector<8x16xbf16>
    %c0_6 = arith.constant 0 : index
    %c0_7 = arith.constant 0 : index
    %10 = vector.load %arg3[%c0_6, %c0_7] : memref<16x32xbf16, #tpu.memory_space<vmem>>, vector<16x32xbf16>
    %cst_8 = arith.constant dense<0.000000e+00> : vector<8x32xf32>
    %11 = tpu.matmul %9, %10, %cst_8 {dimension_numbers = #tpu.dot_dimension_numbers<[1], [0], [0], [1], [0, 0, 1, 1], [], []>} : vector<8x16xbf16>, vector<16x32xbf16>, vector<8x32xf32> -> vector<8x32xf32>
    %c1 = arith.constant 1 : index
    %c0_9 = arith.constant 0 : index
    %12 = vector.load %arg7[%c1, %c0_9] : memref<8x128xf32, #tpu.memory_space<vmem>>, vector<1x32xf32>
    %13 = vector.broadcast %12 : vector<1x32xf32> to vector<8x32xf32>
    %14 = arith.addf %11, %13 : vector<8x32xf32>
    %cst_10 = arith.constant 0.000000e+00 : f32
    %15 = vector.broadcast %cst_10 : f32 to vector<8x32xf32>
    %16 = arith.maximumf %14, %15 : vector<8x32xf32>
    %17 = arith.truncf %16 : vector<8x32xf32> to vector<8x32xbf16>
    %c0_11 = arith.constant 0 : index
    %c0_12 = arith.constant 0 : index
    %18 = vector.load %arg4[%c0_11, %c0_12] : memref<32x100xbf16, #tpu.memory_space<vmem>>, vector<32x100xbf16>
    %cst_13 = arith.constant dense<0.000000e+00> : vector<8x100xf32>
    %19 = tpu.matmul %17, %18, %cst_13 {dimension_numbers = #tpu.dot_dimension_numbers<[1], [0], [0], [1], [0, 0, 1, 1], [], []>} : vector<8x32xbf16>, vector<32x100xbf16>, vector<8x100xf32> -> vector<8x100xf32>
    %c2 = arith.constant 2 : index
    %c0_14 = arith.constant 0 : index
    %20 = vector.load %arg7[%c2, %c0_14] : memref<8x128xf32, #tpu.memory_space<vmem>>, vector<1x100xf32>
    %21 = vector.broadcast %20 : vector<1x100xf32> to vector<8x100xf32>
    %22 = arith.addf %19, %21 : vector<8x100xf32>
    %cst_15 = arith.constant 0.000000e+00 : f32
    %23 = vector.broadcast %cst_15 : f32 to vector<8x100xf32>
    %24 = arith.maximumf %22, %23 : vector<8x100xf32>
    %25 = arith.truncf %24 : vector<8x100xf32> to vector<8x100xbf16>
    %c0_16 = arith.constant 0 : index
    %c0_17 = arith.constant 0 : index
    %26 = vector.load %arg5[%c0_16, %c0_17] : memref<100x40xbf16, #tpu.memory_space<vmem>>, vector<100x40xbf16>
    %cst_18 = arith.constant dense<0.000000e+00> : vector<8x40xf32>
    %27 = tpu.matmul %25, %26, %cst_18 {dimension_numbers = #tpu.dot_dimension_numbers<[1], [0], [0], [1], [0, 0, 1, 1], [], []>} : vector<8x100xbf16>, vector<100x40xbf16>, vector<8x40xf32> -> vector<8x40xf32>
    %c3 = arith.constant 3 : index
    %c0_19 = arith.constant 0 : index
    %28 = vector.load %arg7[%c3, %c0_19] : memref<8x128xf32, #tpu.memory_space<vmem>>, vector<1x40xf32>
    %29 = vector.broadcast %28 : vector<1x40xf32> to vector<8x40xf32>
    %30 = arith.addf %27, %29 : vector<8x40xf32>
    %cst_20 = arith.constant 0.000000e+00 : f32
    %31 = vector.broadcast %cst_20 : f32 to vector<8x40xf32>
    %32 = arith.maximumf %30, %31 : vector<8x40xf32>
    %c0_21 = arith.constant 0 : index
    %c0_22 = arith.constant 0 : index
    %33 = vector.load %arg6[%c0_21, %c0_22] : memref<1x40xf32, #tpu.memory_space<vmem>>, vector<1x40xf32>
    %34 = vector.broadcast %33 : vector<1x40xf32> to vector<8x40xf32>
    %35 = arith.mulf %32, %34 : vector<8x40xf32>
    %cst_23 = arith.constant dense<0.000000e+00> : vector<8xf32>
    %36 = vector.multi_reduction <add>, %35, %cst_23 [1] : vector<8x40xf32> to vector<8xf32>
    %37 = vector.shape_cast %36 : vector<8xf32> to vector<8x1xf32>
    %c4 = arith.constant 4 : index
    %c0_24 = arith.constant 0 : index
    %38 = vector.load %arg7[%c4, %c0_24] : memref<8x128xf32, #tpu.memory_space<vmem>>, vector<1x1xf32>
    %39 = vector.broadcast %38 : vector<1x1xf32> to vector<8x1xf32>
    %40 = arith.addf %37, %39 : vector<8x1xf32>
    %c0_25 = arith.constant 0 : index
    %c0_26 = arith.constant 0 : index
    %41 = vector.load %arg8[%c0_25, %c0_26] : memref<8x1xf32, #tpu.memory_space<vmem>>, vector<8x1xf32>
    tpu.vector_store %arg8[%c0_25, %c0_26], %40 {strides = array<i32>} : memref<8x1xf32, #tpu.memory_space<vmem>>, vector<8x1xf32>,
    return
  }
  func.func @transform_0(%arg0: i32) -> (i32, i32) {
    %c0_i32 = arith.constant 0 : i32
    %c0_i32_0 = arith.constant 0 : i32
    return %arg0, %c0_i32 : i32, i32
  }
  func.func @transform_1(%arg0: i32) -> (i32, i32) {
    %c0_i32 = arith.constant 0 : i32
    %c0_i32_0 = arith.constant 0 : i32
    %c0_i32_1 = arith.constant 0 : i32
    return %c0_i32, %c0_i32_0 : i32, i32
  }
  func.func @transform_2(%arg0: i32) -> (i32, i32) {
    %c0_i32 = arith.constant 0 : i32
    %c0_i32_0 = arith.constant 0 : i32
    %c0_i32_1 = arith.constant 0 : i32
    return %c0_i32, %c0_i32_0 : i32, i32
  }
  func.func @transform_3(%arg0: i32) -> (i32, i32) {
    %c0_i32 = arith.constant 0 : i32
    %c0_i32_0 = arith.constant 0 : i32
    %c0_i32_1 = arith.constant 0 : i32
    return %c0_i32, %c0_i32_0 : i32, i32
  }
  func.func @transform_4(%arg0: i32) -> (i32, i32) {
    %c0_i32 = arith.constant 0 : i32
    %c0_i32_0 = arith.constant 0 : i32
    %c0_i32_1 = arith.constant 0 : i32
    return %c0_i32, %c0_i32_0 : i32, i32
  }
  func.func @transform_5(%arg0: i32) -> (i32, i32) {
    %c0_i32 = arith.constant 0 : i32
    %c0_i32_0 = arith.constant 0 : i32
    %c0_i32_1 = arith.constant 0 : i32
    return %c0_i32, %c0_i32_0 : i32, i32
  }
  func.func @transform_6(%arg0: i32) -> (i32, i32) {
    %c0_i32 = arith.constant 0 : i32
    %c0_i32_0 = arith.constant 0 : i32
    %c0_i32_1 = arith.constant 0 : i32
    return %c0_i32, %c0_i32_0 : i32, i32
  }
  func.func @transform_7(%arg0: i32) -> (i32, i32) {
    %c0_i32 = arith.constant 0 : i32
    %c0_i32_0 = arith.constant 0 : i32
    return %arg0, %c0_i32 : i32, i32
  }
}

</mosaic_0001>

<llo_original>
// kernel: tpu_custom_call.1
$region0: #{tpu_custom_call.1}
  #allocation0 [shape = 'u32[]', space=smem, size = 0x4, offset = 0x4, fixed_abs, tag = 'smem constant byte address 0x4 - core index']
  #allocation1 [shape = 'u32[144,128]{1,0:T(1,128)}', space=vmem, size = 0x12000, scoped, tag = 'internal scratch']
  %s0 = inlined_call_operand.vmem [shape: f32[24,8], index: 0, kind: input, shape index: {}]
  %s1 = inlined_call_operand.vmem [shape: bf16[8,16], index: 1, kind: input, shape index: {}]
  %s2 = inlined_call_operand.vmem [shape: bf16[16,32], index: 2, kind: input, shape index: {}]
  %s3 = inlined_call_operand.vmem [shape: bf16[32,100], index: 3, kind: input, shape index: {}]
  %s4 = inlined_call_operand.vmem [shape: bf16[100,40], index: 4, kind: input, shape index: {}]
  %s5 = inlined_call_operand.vmem [shape: f32[1,40], index: 5, kind: input, shape index: {}]
  %s6 = inlined_call_operand.vmem [shape: f32[8,128], index: 6, kind: input, shape index: {}]
  %s7 = inlined_call_operand.vmem [shape: f32[24,1], index: 7, kind: output, shape index: {}]
  %s8 = sld [smem:[#allocation0]]
  $region61: #{tpu_custom_call.1} parent=0
    _
  %s10 = ssub.s32 1, %s8
  %s11 = scalar_select 0, %s10, %s8
  loop: start=0, step=1, limit=5
  $region2: #{tpu_custom_call.1} parent=0 // loop_pre_header
    _
  $region3: #{tpu_custom_call.1} parent=0 // loop_header
    %s13 = sphi 0, %s17
    %p14 = scmp.ge.s32.totalorder %s13, 5
    %s23 = sphi 0, %s25
    %s26 = sphi 0, %s23
    %s27 = sphi 0, %s26
    %s43 = sphi 0, %s27
    %s47 = sphi 0, %s47
    %s49 = sphi 0, %s47
    %s50 = sphi 0, %s49
    %s64 = sphi 0, %s50
    %s68 = sphi 0, %s68
    %s70 = sphi 0, %s68
    %s71 = sphi 0, %s70
    %s85 = sphi 0, %s71
    %s89 = sphi 0, %s89
    %s91 = sphi 0, %s89
    %s92 = sphi 0, %s91
    %s106 = sphi 0, %s92
    %s110 = sphi 0, %s110
    %s112 = sphi 0, %s110
    %s113 = sphi 0, %s112
    %s127 = sphi 0, %s113
    %s131 = sphi 0, %s131
    %s133 = sphi 0, %s131
    %s134 = sphi 0, %s133
    %s148 = sphi 0, %s134
    %s152 = sphi 0, %s152
    %s154 = sphi 0, %s152
    %s155 = sphi 0, %s154
    %s169 = sphi 0, %s155
    %s175 = sphi 0, %s177
    %s178 = sphi 0, %s175
    %s179 = sphi 0, %s178
    %s195 = sphi 0, %s179
  $region4: #{tpu_custom_call.1} parent=0 // loop_header_branch
    %16 = sbr.rel (%p14) target = $region8
  $region5: #{tpu_custom_call.1} parent=0 // loop_body
    %s18 = ssub.s32 %s13, 1
    %s19 = ssub.s32 %s13, 2
    %s20 = sadd.s32 %s13, 1
    %s21 = ssub.s32 %s13, %s20
    %p22 = scmp.eq.s32.totalorder %s21, 0
    %s24 = sadd.s32 %s23, 1
    %s25 = scalar_select %p22, %s23, %s24
    %p28 = pneg %p22
    %p29 = scmp.eq.s32.totalorder %s13, 2
    %p30 = por %p28, %p29
    %p31 = scmp.ne.s32.totalorder %s23, %s26
    %p32 = scmp.eq.s32.totalorder %s13, 0
    %p33 = por %p31, %p32
    %p34 = scmp.ne.s32.totalorder %s23, %s26
    %p35 = scmp.eq.s32.totalorder %s18, 2
    %p36 = por %p34, %p35
    %p37 = scmp.ne.s32.totalorder %s26, %s27
    %p38 = scmp.eq.s32.totalorder %s18, 0
    %p39 = por %p37, %p38
    %p40 = scmp.ne.s32.totalorder %s26, %s27
    %p41 = scmp.eq.s32.totalorder %s19, 2
    %p42 = por %p40, %p41
    %p44 = scmp.ne.s32.totalorder %s27, %s43
    %p45 = scmp.eq.s32.totalorder %s19, 0
    %p46 = por %p44, %p45
    %s48 = sadd.s32 %s47, 1
    %p51 = scmp.eq.s32.totalorder %s13, 2
    %p52 = scmp.ne.s32.totalorder %s47, %s49
    %p53 = scmp.eq.s32.totalorder %s13, 0
    %p54 = por %p52, %p53
    %p55 = scmp.ne.s32.totalorder %s47, %s49
    %p56 = scmp.eq.s32.totalorder %s18, 2
    %p57 = por %p55, %p56
    %p58 = scmp.ne.s32.totalorder %s49, %s50
    %p59 = scmp.eq.s32.totalorder %s18, 0
    %p60 = por %p58, %p59
    %p61 = scmp.ne.s32.totalorder %s49, %s50
    %p62 = scmp.eq.s32.totalorder %s19, 2
    %p63 = por %p61, %p62
    %p65 = scmp.ne.s32.totalorder %s50, %s64
    %p66 = scmp.eq.s32.totalorder %s19, 0
    %p67 = por %p65, %p66
    %s69 = sadd.s32 %s68, 1
    %p72 = scmp.eq.s32.totalorder %s13, 2
    %p73 = scmp.ne.s32.totalorder %s68, %s70
    %p74 = scmp.eq.s32.totalorder %s13, 0
    %p75 = por %p73, %p74
    %p76 = scmp.ne.s32.totalorder %s68, %s70
    %p77 = scmp.eq.s32.totalorder %s18, 2
    %p78 = por %p76, %p77
    %p79 = scmp.ne.s32.totalorder %s70, %s71
    %p80 = scmp.eq.s32.totalorder %s18, 0
    %p81 = por %p79, %p80
    %p82 = scmp.ne.s32.totalorder %s70, %s71
    %p83 = scmp.eq.s32.totalorder %s19, 2
    %p84 = por %p82, %p83
    %p86 = scmp.ne.s32.totalorder %s71, %s85
    %p87 = scmp.eq.s32.totalorder %s19, 0
    %p88 = por %p86, %p87
    %s90 = sadd.s32 %s89, 1
    %p93 = scmp.eq.s32.totalorder %s13, 2
    %p94 = scmp.ne.s32.totalorder %s89, %s91
    %p95 = scmp.eq.s32.totalorder %s13, 0
    %p96 = por %p94, %p95
    %p97 = scmp.ne.s32.totalorder %s89, %s91
    %p98 = scmp.eq.s32.totalorder %s18, 2
    %p99 = por %p97, %p98
    %p100 = scmp.ne.s32.totalorder %s91, %s92
    %p101 = scmp.eq.s32.totalorder %s18, 0
    %p102 = por %p100, %p101
    %p103 = scmp.ne.s32.totalorder %s91, %s92
    %p104 = scmp.eq.s32.totalorder %s19, 2
    %p105 = por %p103, %p104
    %p107 = scmp.ne.s32.totalorder %s92, %s106
    %p108 = scmp.eq.s32.totalorder %s19, 0
    %p109 = por %p107, %p108
    %s111 = sadd.s32 %s110, 1
    %p114 = scmp.eq.s32.totalorder %s13, 2
    %p115 = scmp.ne.s32.totalorder %s110, %s112
    %p116 = scmp.eq.s32.totalorder %s13, 0
    %p117 = por %p115, %p116
    %p118 = scmp.ne.s32.totalorder %s110, %s112
    %p119 = scmp.eq.s32.totalorder %s18, 2
    %p120 = por %p118, %p119
    %p121 = scmp.ne.s32.totalorder %s112, %s113
    %p122 = scmp.eq.s32.totalorder %s18, 0
    %p123 = por %p121, %p122
    %p124 = scmp.ne.s32.totalorder %s112, %s113
    %p125 = scmp.eq.s32.totalorder %s19, 2
    %p126 = por %p124, %p125
    %p128 = scmp.ne.s32.totalorder %s113, %s127
    %p129 = scmp.eq.s32.totalorder %s19, 0
    %p130 = por %p128, %p129
    %s132 = sadd.s32 %s131, 1
    %p135 = scmp.eq.s32.totalorder %s13, 2
    %p136 = scmp.ne.s32.totalorder %s131, %s133
    %p137 = scmp.eq.s32.totalorder %s13, 0
    %p138 = por %p136, %p137
    %p139 = scmp.ne.s32.totalorder %s131, %s133
    %p140 = scmp.eq.s32.totalorder %s18, 2
    %p141 = por %p139, %p140
    %p142 = scmp.ne.s32.totalorder %s133, %s134
    %p143 = scmp.eq.s32.totalorder %s18, 0
    %p144 = por %p142, %p143
    %p145 = scmp.ne.s32.totalorder %s133, %s134
    %p146 = scmp.eq.s32.totalorder %s19, 2
    %p147 = por %p145, %p146
    %p149 = scmp.ne.s32.totalorder %s134, %s148
    %p150 = scmp.eq.s32.totalorder %s19, 0
    %p151 = por %p149, %p150
    %s153 = sadd.s32 %s152, 1
    %p156 = scmp.eq.s32.totalorder %s13, 2
    %p157 = scmp.ne.s32.totalorder %s152, %s154
    %p158 = scmp.eq.s32.totalorder %s13, 0
    %p159 = por %p157, %p158
    %p160 = scmp.ne.s32.totalorder %s152, %s154
    %p161 = scmp.eq.s32.totalorder %s18, 2
    %p162 = por %p160, %p161
    %p163 = scmp.ne.s32.totalorder %s154, %s155
    %p164 = scmp.eq.s32.totalorder %s18, 0
    %p165 = por %p163, %p164
    %p166 = scmp.ne.s32.totalorder %s154, %s155
    %p167 = scmp.eq.s32.totalorder %s19, 2
    %p168 = por %p166, %p167
    %p170 = scmp.ne.s32.totalorder %s155, %s169
    %p171 = scmp.eq.s32.totalorder %s19, 0
    %p172 = por %p170, %p171
    %s173 = ssub.s32 %s13, %s20
    %p174 = scmp.eq.s32.totalorder %s173, 0
    %s176 = sadd.s32 %s175, 1
    %s177 = scalar_select %p174, %s175, %s176
    %p180 = pneg %p174
    %p181 = scmp.eq.s32.totalorder %s13, 2
    %p182 = por %p180, %p181
    %p183 = scmp.ne.s32.totalorder %s175, %s178
    %p184 = scmp.eq.s32.totalorder %s13, 0
    %p185 = por %p183, %p184
    %p186 = scmp.ne.s32.totalorder %s175, %s178
    %p187 = scmp.eq.s32.totalorder %s18, 2
    %p188 = por %p186, %p187
    %p189 = scmp.ne.s32.totalorder %s178, %s179
    %p190 = scmp.eq.s32.totalorder %s18, 0
    %p191 = por %p189, %p190
    %p192 = scmp.ne.s32.totalorder %s178, %s179
    %p193 = scmp.eq.s32.totalorder %s19, 2
    %p194 = por %p192, %p193
    %p196 = scmp.ne.s32.totalorder %s179, %s195
    %p197 = scmp.eq.s32.totalorder %s19, 0
    %p198 = por %p196, %p197
    %p199 = scmp.le.s32.totalorder 1, %s13
    %p200 = scmp.lt.s32.totalorder %s13, 4
    %p201 = pnand %p199, %p200
    %p202 = pneg %p201
    // Predicated region
    $region9: #{tpu_custom_call.1} parent=5 // pred_check
      _
    $region10: #{tpu_custom_call.1} parent=5 // pred_check_branch
      %204 = sbr.rel (%p201) target = $region12
    $region11: #{tpu_custom_call.1} parent=5 // pred_region
      %s205 = ssub.s32 %s13, 1
      // Predicated region
      $region13: #{tpu_custom_call.1} parent=11 // pred_check
        %p206 = pneg %p60
      $region14: #{tpu_custom_call.1} parent=11 // pred_check_branch
        %208 = sbr.rel (%p206) target = $region16
      $region15: #{tpu_custom_call.1} parent=11 // pred_region
        _
      $region16: #{tpu_custom_call.1} parent=11 // pred_fallthru
        _
      // Predicated region
      $region17: #{tpu_custom_call.1} parent=11 // pred_check
        %p209 = pneg %p81
      $region18: #{tpu_custom_call.1} parent=11 // pred_check_branch
        %211 = sbr.rel (%p209) target = $region20
      $region19: #{tpu_custom_call.1} parent=11 // pred_region
        _
      $region20: #{tpu_custom_call.1} parent=11 // pred_fallthru
        _
      // Predicated region
      $region21: #{tpu_custom_call.1} parent=11 // pred_check
        %p212 = pneg %p102
      $region22: #{tpu_custom_call.1} parent=11 // pred_check_branch
        %214 = sbr.rel (%p212) target = $region24
      $region23: #{tpu_custom_call.1} parent=11 // pred_region
        _
      $region24: #{tpu_custom_call.1} parent=11 // pred_fallthru
        _
      // Predicated region
      $region25: #{tpu_custom_call.1} parent=11 // pred_check
        %p215 = pneg %p123
      $region26: #{tpu_custom_call.1} parent=11 // pred_check_branch
        %217 = sbr.rel (%p215) target = $region28
      $region27: #{tpu_custom_call.1} parent=11 // pred_region
        _
      $region28: #{tpu_custom_call.1} parent=11 // pred_fallthru
        _
      // Predicated region
      $region29: #{tpu_custom_call.1} parent=11 // pred_check
        %p218 = pneg %p144
      $region30: #{tpu_custom_call.1} parent=11 // pred_check_branch
        %220 = sbr.rel (%p218) target = $region32
      $region31: #{tpu_custom_call.1} parent=11 // pred_region
        _
      $region32: #{tpu_custom_call.1} parent=11 // pred_fallthru
        _
      // Predicated region
      $region33: #{tpu_custom_call.1} parent=11 // pred_check
        %p221 = pneg %p165
      $region34: #{tpu_custom_call.1} parent=11 // pred_check_branch
        %223 = sbr.rel (%p221) target = $region36
      $region35: #{tpu_custom_call.1} parent=11 // pred_region
        _
      $region36: #{tpu_custom_call.1} parent=11 // pred_fallthru
        _
    $region12: #{tpu_custom_call.1} parent=5 // pred_fallthru
      _
    %p224 = scmp.lt.s32.totalorder %s13, 3
    // Predicated region
    $region37: #{tpu_custom_call.1} parent=5 // pred_check
      %p225 = pneg %p224
    $region38: #{tpu_custom_call.1} parent=5 // pred_check_branch
      %227 = sbr.rel (%p225) target = $region40
    $region39: #{tpu_custom_call.1} parent=5 // pred_region
      // Predicated region
      $region41: #{tpu_custom_call.1} parent=39 // pred_check
        %p228 = pneg %p33
      $region42: #{tpu_custom_call.1} parent=39 // pred_check_branch
        %230 = sbr.rel (%p228) target = $region44
      $region43: #{tpu_custom_call.1} parent=39 // pred_region
        %p231 = scmp.lt.s32.totalorder %s13, 2
        %s232 = scalar_select %p231, %s13, 2
        %s233 = smul.addr %s232, 8
        %s234 = scalar_lea.vmem %s0, %s233
      $region44: #{tpu_custom_call.1} parent=39 // pred_fallthru
        _
    $region40: #{tpu_custom_call.1} parent=5 // pred_fallthru
      _
    %p235 = scmp.le.s32.totalorder 1, %s13
    %p236 = scmp.lt.s32.totalorder %s13, 4
    %p237 = pnand %p235, %p236
    %p238 = pneg %p237
    // Predicated region
    $region45: #{tpu_custom_call.1} parent=5 // pred_check
      _
    $region46: #{tpu_custom_call.1} parent=5 // pred_check_branch
      %240 = sbr.rel (%p237) target = $region48
    $region47: #{tpu_custom_call.1} parent=5 // pred_region
      %s241 = ssub.s32 %s13, 1
      %p242 = scmp.lt.s32.totalorder %s18, 2
      %s243 = scalar_select %p242, %s18, 2
      %s244 = smul.addr %s243, 8
      %s245 = scalar_lea.vmem %s0, %s244
      %p246 = pneg %p39
      %p247 = pneg %p36
      %p248 = pneg %p60
      %p249 = pneg %p57
      %p250 = pneg %p81
      %p251 = pneg %p78
      %p252 = pneg %p102
      %p253 = pneg %p99
      %p254 = pneg %p123
      %p255 = pneg %p120
      %p256 = pneg %p144
      %p257 = pneg %p141
      %p258 = pneg %p165
      %p259 = pneg %p162
      %p260 = pneg %p191
      %p261 = pneg %p188
      %p262 = scmp.lt.s32.totalorder %s18, 2
      %s263 = scalar_select %p262, %s18, 2
      %s264 = smul.addr %s263, 8
      %s265 = scalar_lea.vmem %s7, %s264
      %p266 = scmp.lt.s32.totalorder %s18, 2
      %s267 = scalar_select %p266, %s18, 2
      %s268 = smul.addr %s267, 8
      %s269 = scalar_lea.vmem %s0, %s268
      %p270 = scmp.lt.s32.totalorder %s18, 2
      %s271 = scalar_select %p270, %s18, 2
      %s272 = smul.addr %s271, 8
      %s273 = scalar_lea.vmem %s7, %s272
      %v275 = vld [vmem:[%s269] sm:$0xff]
      %v276 = vpack.c.bf16 %v275, %v275
      %v277 = vld [vmem:[%s1] sm:$0xf]
      %v278 = vld [vmem:[%s6] sm:$0x1]
      %v279 = vlaneseq
      %v280 = vshrl.u32 %v279, 7
      %v281 = vsub.s32 0, %v280
      %v282 = vrot.slane %v278, %v281
      %vm283 = vcmask 64512
      %v285 = vsel %vm283, %v276, 0
      %vm287 = vcmask 1043456
      %v289 = vsel %vm287, %v277, 0
      %291 = vmatprep.subr.bf16.mxu0 0
      %292 = vmatpush1.bf16.msra.mxu0 0
      %293 = vmatprep.subr.bf16.mxu0 0
      %294 = vmatpush1.bf16.msra.mxu0 0
      %295 = vmatprep.subr.bf16.mxu0 0
      %296 = vmatpush1.bf16.msra.mxu0 0
      %297 = vmatprep.subr.bf16.mxu0 0
      %298 = vmatpush1.bf16.msra.mxu0 0
      %299 = vmatprep.subr.bf16.mxu0 0
      %300 = vmatpush1.bf16.msra.mxu0 0
      %301 = vmatprep.subr.bf16.mxu0 0
      %302 = vmatpush1.bf16.msra.mxu0 0
      %303 = vmatprep.subr.bf16.mxu0 0
      %304 = vmatpush1.bf16.msra.mxu0 0
      %305 = vmatprep.subr.bf16.mxu0 0
      %306 = vmatpush1.bf16.msra.mxu0 %v289
      %307 = vmatprep.subr.bf16.mxu0 0
      %308 = vmatpush2.bf16.msra.mxu0 0
      %309 = vmatprep.subr.bf16.mxu0 0
      %310 = vmatpush2.bf16.msra.mxu0 0
      %311 = vmatprep.subr.bf16.mxu0 0
      %312 = vmatpush2.bf16.msra.mxu0 0
      %313 = vmatprep.subr.bf16.mxu0 0
      %314 = vmatpush2.bf16.msra.mxu0 0
      %315 = vmatprep.subr.bf16.mxu0 0
      %316 = vmatpush2.bf16.msra.mxu0 0
      %317 = vmatprep.subr.bf16.mxu0 0
      %318 = vmatpush2.bf16.msra.mxu0 0
      %319 = vmatprep.subr.bf16.mxu0 0
      %320 = vmatpush2.bf16.msra.mxu0 0
      %321 = vmatprep.subr.bf16.mxu0 0
      %322 = vmatpush2.bf16.msra.mxu0 0
      %323 = vmatprep.mubr.bf16.mxu0 0
      %324 = vmatmul.mubr.bf16.gmra.mxu0 %v285
      %v325 = vpop.f32.mrf.mxu0
      %v326 = vadd.f32 %v282, %v325
      %v327 = vpop.f32.mrf.mxu0
      %v328 = vpop.f32.mrf.mxu0
      %v329 = vpop.f32.mrf.mxu0
      %330 = vdwg.mxu0
      %v331 = vmax.f32 %v326, 0.0
      %v332 = vpack.c.bf16 %v331, %v331
      %v333 = vld [vmem:[%s2] sm:$0xf]
      %v334 = vld [vmem:[%s2 + $0x4] sm:$0xf]
      %v335 = vld [vmem:[%s6 + $0x1] sm:$0x1]
      %v336 = vlaneseq
      %v337 = vshrl.u32 %v336, 7
      %v338 = vsub.s32 0, %v337
      %v339 = vrot.slane %v335, %v338
      %v342 = vunpack.c.l.b16 %v333
      %v343 = vunpack.c.l.b16 %v334
      %v344 = vpack.c.b16 %v343, %v342
      %vm346 = vcmask 130048
      %v348 = vsel %vm346, %v332, 0
      %350 = vmatprep.subr.bf16.mxu0 0
      %351 = vmatpush1.bf16.msra.mxu0 0
      %352 = vmatprep.subr.bf16.mxu0 0
      %353 = vmatpush1.bf16.msra.mxu0 0
      %354 = vmatprep.subr.bf16.mxu0 0
      %355 = vmatpush1.bf16.msra.mxu0 0
      %356 = vmatprep.subr.bf16.mxu0 0
      %357 = vmatpush1.bf16.msra.mxu0 0
      %358 = vmatprep.subr.bf16.mxu0 0
      %359 = vmatpush1.bf16.msra.mxu0 0
      %360 = vmatprep.subr.bf16.mxu0 0
      %361 = vmatpush1.bf16.msra.mxu0 0
      %362 = vmatprep.subr.bf16.mxu0 0
      %363 = vmatpush1.bf16.msra.mxu0 0
      %364 = vmatprep.subr.bf16.mxu0 0
      %365 = vmatpush1.bf16.msra.mxu0 %v344
      %366 = vmatprep.subr.bf16.mxu0 0
      %367 = vmatpush2.bf16.msra.mxu0 0
      %368 = vmatprep.subr.bf16.mxu0 0
      %369 = vmatpush2.bf16.msra.mxu0 0
      %370 = vmatprep.subr.bf16.mxu0 0
      %371 = vmatpush2.bf16.msra.mxu0 0
      %372 = vmatprep.subr.bf16.mxu0 0
      %373 = vmatpush2.bf16.msra.mxu0 0
      %374 = vmatprep.subr.bf16.mxu0 0
      %375 = vmatpush2.bf16.msra.mxu0 0
      %376 = vmatprep.subr.bf16.mxu0 0
      %377 = vmatpush2.bf16.msra.mxu0 0
      %378 = vmatprep.subr.bf16.mxu0 0
      %379 = vmatpush2.bf16.msra.mxu0 0
      %380 = vmatprep.subr.bf16.mxu0 0
      %381 = vmatpush2.bf16.msra.mxu0 0
      %382 = vmatprep.mubr.bf16.mxu0 0
      %383 = vmatmul.mubr.bf16.gmra.mxu0 %v348
      %v384 = vpop.f32.mrf.mxu0
      %v385 = vadd.f32 %v339, %v384
      %v386 = vpop.f32.mrf.mxu0
      %v387 = vpop.f32.mrf.mxu0
      %v388 = vpop.f32.mrf.mxu0
      %389 = vdwg.mxu0
      %v390 = vmax.f32 %v385, 0.0
      %v391 = vpack.c.bf16 %v390, %v390
      %v392 = vld [vmem:[%s3] sm:$0xf]
      %v393 = vld [vmem:[%s3 + $0x4] sm:$0xf]
      %v394 = vld [vmem:[%s3 + $0x8] sm:$0xf]
      %v395 = vld [vmem:[%s3 + $0xc] sm:$0xf]
      %v396 = vld [vmem:[%s6 + $0x2] sm:$0x1]
      %v397 = vlaneseq
      %v398 = vshrl.u32 %v397, 7
      %v399 = vsub.s32 0, %v398
      %v400 = vrot.slane %v396, %v399
      %v405 = vunpack.c.l.b16 %v392
      %v406 = vunpack.c.l.b16 %v393
      %v407 = vunpack.c.l.b16 %v394
      %v408 = vunpack.c.l.b16 %v395
      %v409 = vpack.c.b16 %v406, %v405
      %v410 = vpack.c.b16 %v408, %v407
      %vm413 = vcmask 261120
      %v415 = vsel %vm413, %v391, 0
      %417 = vmatprep.subr.bf16.mxu0 0
      %418 = vmatpush1.bf16.msra.mxu0 0
      %419 = vmatprep.subr.bf16.mxu0 0
      %420 = vmatpush1.bf16.msra.mxu0 0
      %421 = vmatprep.subr.bf16.mxu0 0
      %422 = vmatpush1.bf16.msra.mxu0 0
      %423 = vmatprep.subr.bf16.mxu0 0
      %424 = vmatpush1.bf16.msra.mxu0 0
      %425 = vmatprep.subr.bf16.mxu0 0
      %426 = vmatpush1.bf16.msra.mxu0 0
      %427 = vmatprep.subr.bf16.mxu0 0
      %428 = vmatpush1.bf16.msra.mxu0 0
      %429 = vmatprep.subr.bf16.mxu0 0
      %430 = vmatpush1.bf16.msra.mxu0 %v410
      %431 = vmatprep.subr.bf16.mxu0 0
      %432 = vmatpush1.bf16.msra.mxu0 %v409
      %433 = vmatprep.subr.bf16.mxu0 0
      %434 = vmatpush2.bf16.msra.mxu0 0
      %435 = vmatprep.subr.bf16.mxu0 0
      %436 = vmatpush2.bf16.msra.mxu0 0
      %437 = vmatprep.subr.bf16.mxu0 0
      %438 = vmatpush2.bf16.msra.mxu0 0
      %439 = vmatprep.subr.bf16.mxu0 0
      %440 = vmatpush2.bf16.msra.mxu0 0
      %441 = vmatprep.subr.bf16.mxu0 0
      %442 = vmatpush2.bf16.msra.mxu0 0
      %443 = vmatprep.subr.bf16.mxu0 0
      %444 = vmatpush2.bf16.msra.mxu0 0
      %445 = vmatprep.subr.bf16.mxu0 0
      %446 = vmatpush2.bf16.msra.mxu0 0
      %447 = vmatprep.subr.bf16.mxu0 0
      %448 = vmatpush2.bf16.msra.mxu0 0
      %449 = vmatprep.mubr.bf16.mxu0 0
      %450 = vmatmul.mubr.bf16.gmra.mxu0 %v415
      %v451 = vpop.f32.mrf.mxu0
      %v452 = vadd.f32 %v400, %v451
      %v453 = vpop.f32.mrf.mxu0
      %v454 = vpop.f32.mrf.mxu0
      %v455 = vpop.f32.mrf.mxu0
      %456 = vdwg.mxu0
      %v457 = vmax.f32 %v452, 0.0
      %v458 = vpack.c.bf16 %v457, %v457
      %v459 = vld [vmem:[%s4] sm:$0xf]
      %v460 = vld [vmem:[%s4 + $0x4] sm:$0xf]
      %v461 = vld [vmem:[%s4 + $0x8] sm:$0xf]
      %v462 = vld [vmem:[%s4 + $0xc] sm:$0xf]
      %v463 = vld [vmem:[%s4 + $0x10] sm:$0xf]
      %v464 = vld [vmem:[%s4 + $0x14] sm:$0xf]
      %v465 = vld [vmem:[%s4 + $0x18] sm:$0xf]
      %v466 = vld [vmem:[%s4 + $0x1c] sm:$0xf]
      %v467 = vld [vmem:[%s4 + $0x20] sm:$0xf]
      %v468 = vld [vmem:[%s4 + $0x24] sm:$0xf]
      %v469 = vld [vmem:[%s4 + $0x28] sm:$0xf]
      %v470 = vld [vmem:[%s4 + $0x2c] sm:$0xf]
      %v471 = vld [vmem:[%s4 + $0x30] sm:$0x3]
      %v472 = vld [vmem:[%s6 + $0x3] sm:$0x1]
      %v473 = vlaneseq
      %v474 = vshrl.u32 %v473, 7
      %v475 = vsub.s32 0, %v474
      %v476 = vrot.slane %v472, %v475
      %v490 = vunpack.c.l.b16 %v459
      %v491 = vunpack.c.l.b16 %v460
      %v492 = vunpack.c.l.b16 %v461
      %v493 = vunpack.c.l.b16 %v462
      %v494 = vunpack.c.l.b16 %v463
      %v495 = vunpack.c.l.b16 %v464
      %v496 = vunpack.c.l.b16 %v465
      %v497 = vunpack.c.l.b16 %v466
      %v498 = vunpack.c.l.b16 %v467
      %v499 = vunpack.c.l.b16 %v468
      %v500 = vunpack.c.l.b16 %v469
      %v501 = vunpack.c.l.b16 %v470
      %v502 = vunpack.c.l.b16 %v471
      %v503 = vpack.c.b16 %v491, %v490
      %v504 = vpack.c.b16 %v493, %v492
      %v505 = vpack.c.b16 %v495, %v494
      %v506 = vpack.c.b16 %v497, %v496
      %v507 = vpack.c.b16 %v499, %v498
      %v508 = vpack.c.b16 %v501, %v500
      %v509 = vpack.c.b16 %v502, %v502
      %vm516 = vcmask 818176
      %v518 = vsel %vm516, %v458, 0
      %vm520 = vcmask 1041408
      %v522 = vsel %vm520, %v509, 0
      %524 = vmatprep.subr.bf16.mxu0 0
      %525 = vmatpush1.bf16.msra.mxu0 0
      %526 = vmatprep.subr.bf16.mxu0 0
      %527 = vmatpush1.bf16.msra.mxu0 %v522
      %528 = vmatprep.subr.bf16.mxu0 0
      %529 = vmatpush1.bf16.msra.mxu0 %v508
      %530 = vmatprep.subr.bf16.mxu0 0
      %531 = vmatpush1.bf16.msra.mxu0 %v507
      %532 = vmatprep.subr.bf16.mxu0 0
      %533 = vmatpush1.bf16.msra.mxu0 %v506
      %534 = vmatprep.subr.bf16.mxu0 0
      %535 = vmatpush1.bf16.msra.mxu0 %v505
      %536 = vmatprep.subr.bf16.mxu0 0
      %537 = vmatpush1.bf16.msra.mxu0 %v504
      %538 = vmatprep.subr.bf16.mxu0 0
      %539 = vmatpush1.bf16.msra.mxu0 %v503
      %540 = vmatprep.subr.bf16.mxu0 0
      %541 = vmatpush2.bf16.msra.mxu0 0
      %542 = vmatprep.subr.bf16.mxu0 0
      %543 = vmatpush2.bf16.msra.mxu0 0
      %544 = vmatprep.subr.bf16.mxu0 0
      %545 = vmatpush2.bf16.msra.mxu0 0
      %546 = vmatprep.subr.bf16.mxu0 0
      %547 = vmatpush2.bf16.msra.mxu0 0
      %548 = vmatprep.subr.bf16.mxu0 0
      %549 = vmatpush2.bf16.msra.mxu0 0
      %550 = vmatprep.subr.bf16.mxu0 0
      %551 = vmatpush2.bf16.msra.mxu0 0
      %552 = vmatprep.subr.bf16.mxu0 0
      %553 = vmatpush2.bf16.msra.mxu0 0
      %554 = vmatprep.subr.bf16.mxu0 0
      %555 = vmatpush2.bf16.msra.mxu0 0
      %556 = vmatprep.mubr.bf16.mxu0 0
      %557 = vmatmul.mubr.bf16.gmra.mxu0 %v518
      %v558 = vpop.f32.mrf.mxu0
      %v559 = vadd.f32 %v476, %v558
      %v560 = vpop.f32.mrf.mxu0
      %v561 = vpop.f32.mrf.mxu0
      %v562 = vpop.f32.mrf.mxu0
      %563 = vdwg.mxu0
      %v564 = vmax.f32 %v559, 0.0
      %v565 = vld [vmem:[%s5] sm:$0x1]
      %v567 = vlaneseq
      %v568 = vshrl.u32 %v567, 7
      %v569 = vsub.s32 0, %v568
      %v570 = vrot.slane %v565, %v569
      %v572 = vmul.f32 %v564, %v570
      %vm573 = vcmask 326656
      %v574 = vsel %vm573, %v572, 0.0
      %575 = vadd.xlane.f32.xlu0 %v574
      %v576 = vpop.xlane.xlu0 %575
      %v577 = vld [vmem:[%s6 + $0x4] sm:$0x1]
      %v578 = vlaneseq
      %v579 = vshrl.u32 %v578, 7
      %v580 = vsub.s32 0, %v579
      %v581 = vrot.slane %v577, %v580
      %v582 = vadd.f32 %v576, %v581
      %vm583 = vcmask 7168
      %584 = vst.msk [vmem:[%s273] sm:$0xff] %vm583, %v582
      %p585 = scmp.lt.s32.totalorder %s18, 2
      %s586 = scalar_select %p585, %s18, 2
      %s587 = smul.addr %s586, 8
      %s588 = scalar_lea.vmem %s7, %s587
      // Predicated region
      $region49: #{tpu_custom_call.1} parent=47 // pred_check
        %p589 = pneg %p188
      $region50: #{tpu_custom_call.1} parent=47 // pred_check_branch
        %591 = sbr.rel (%p589) target = $region52
      $region51: #{tpu_custom_call.1} parent=47 // pred_region
        _
      $region52: #{tpu_custom_call.1} parent=47 // pred_fallthru
        _
    $region48: #{tpu_custom_call.1} parent=5 // pred_fallthru
      _
    %p592 = scmp.le.s32.totalorder 2, %s13
    // Predicated region
    $region53: #{tpu_custom_call.1} parent=5 // pred_check
      %p593 = pneg %p592
    $region54: #{tpu_custom_call.1} parent=5 // pred_check_branch
      %595 = sbr.rel (%p593) target = $region56
    $region55: #{tpu_custom_call.1} parent=5 // pred_region
      %s596 = ssub.s32 %s13, 2
      // Predicated region
      $region57: #{tpu_custom_call.1} parent=55 // pred_check
        %p597 = pneg %p194
      $region58: #{tpu_custom_call.1} parent=55 // pred_check_branch
        %599 = sbr.rel (%p597) target = $region60
      $region59: #{tpu_custom_call.1} parent=55 // pred_region
        %p600 = scmp.lt.s32.totalorder %s19, 2
        %s601 = scalar_select %p600, %s19, 2
        %s602 = smul.addr %s601, 8
        %s603 = scalar_lea.vmem %s7, %s602
      $region60: #{tpu_custom_call.1} parent=55 // pred_fallthru
        _
    $region56: #{tpu_custom_call.1} parent=5 // pred_fallthru
      _
  $region6: #{tpu_custom_call.1} parent=0 // loop_footer
    %s17 = sadd.s32 1, %s13
  $region7: #{tpu_custom_call.1} parent=0 // loop_footer_branch
    %12 = sbr.rel target = $region3
  $region8: #{tpu_custom_call.1} parent=0 // loop_exit
    _

</llo_original>
